<compile_context>
chip_gen: v5e
topology: v5e:2x2
jax: 0.10.0
libtpu: 0.0.40
codegen_flags: <defaults>
</compile_context>

<pallas_src>
import numpy as np
import jax
import jax.numpy as jnp
from jax.experimental import pallas as pl
from jax.experimental.pallas import tpu as pltpu


# ----------------------------------------------------------------------------
# 1-D linear-interpolation matrix, PyTorch semantics (align_corners=False)
# ----------------------------------------------------------------------------
def _interp_matrix(in_size: int, scale: float) -> np.ndarray:
    out_size = int(np.floor(in_size * scale))
    A = np.zeros((out_size, in_size), np.float32)
    for o in range(out_size):
        src = max((o + 0.5) / scale - 0.5, 0.0)
        i0 = min(int(np.floor(src)), in_size - 1)
        i1 = min(i0 + 1, in_size - 1)
        lam = src - float(i0)
        A[o, i0] += 1.0 - lam
        A[o, i1] += lam
    return A


# ----------------------------------------------------------------------------
# Kernel factory: Nb batch elements per grid step, two MXU matmuls each.
# ----------------------------------------------------------------------------
def _make_kernel(nb: int, conv_first: bool):
    def kernel(x_ref, ahw_ref, bmat_ref, o_ref):
        # x_ref:    (nb, Cin*D+1, H*W)   bf16  (last row == 1: bias carrier)
        # ahw_ref:  (H*W, Ho*Wo)         bf16  ((A_H kron A_W)^T)
        # bmat_ref: (Cout*Do, Cin*D+1)   bf16  ([W_conv kron A_D | bias])
        # o_ref:    (nb, Cout*Do, Ho*Wo) f32   lane-dense output slab
        ahw = ahw_ref[...]      # hoisted: loaded once per grid step
        bmat = bmat_ref[...]
        for i in range(nb):     # nb is static and tiny -> unrolled at trace time
            if conv_first:
                # channel/D reduction + D-upsample + bias first (small intermediate)
                y = jnp.dot(bmat, x_ref[i],
                            preferred_element_type=jnp.float32)     # (CoDo, H*W)
                out = jnp.dot(y.astype(jnp.bfloat16), ahw,
                              preferred_element_type=jnp.float32)   # (CoDo, Ho*Wo)
            else:
                z = jnp.dot(x_ref[i], ahw,
                            preferred_element_type=jnp.float32)     # (K, Ho*Wo)
                out = jnp.dot(bmat, z.astype(jnp.bfloat16),
                              preferred_element_type=jnp.float32)   # (CoDo, Ho*Wo)
            o_ref[i] = out
    return kernel


# ----------------------------------------------------------------------------
# Wrapper
# ----------------------------------------------------------------------------
def unet_dsv3(x, weight, bias, scale_factor, *, block_n=None):
    """x: (N, Cin, D, H, W).  weight: (Cout, Cin, 1, 1, 1).  bias: (Cout,)."""
    N, Cin, D, H, W = x.shape
    Cout = weight.shape[0]
    Do = int(np.floor(D * scale_factor))
    Ho = int(np.floor(H * scale_factor))
    Wo = int(np.floor(W * scale_factor))
    HW, HoWo = H * W, Ho * Wo
    K = Cin * D + 1                       # +1: folded bias row
    CoDo = Cout * Do

    # ---- host-side constant interpolation matrices (static shapes) ----
    A_D = _interp_matrix(D, scale_factor)                       # (Do, D)
    A_H = _interp_matrix(H, scale_factor)                       # (Ho, H)
    A_W = _interp_matrix(W, scale_factor)                       # (Wo, W)
    # A_HW[(ho*Wo+wo), (h*W+w)] = A_H[ho,h] * A_W[wo,w]
    A_HW = (A_H[:, None, :, None] * A_W[None, :, None, :]).reshape(HoWo, HW)
    a_hw_t = jnp.asarray(A_HW.T, dtype=jnp.bfloat16)            # (H*W, Ho*Wo)

    # ---- conv weight (x) A_D, with bias folded in as an extra column ----
    Wc = weight.reshape(Cout, Cin).astype(jnp.float32)
    A_Dj = jnp.asarray(A_D)
    bmat = (Wc[:, None, :, None] * A_Dj[None, :, None, :]).reshape(CoDo, Cin * D)
    bias_col = jnp.repeat(bias.astype(jnp.float32), Do).reshape(CoDo, 1)
    bmat_ext = jnp.concatenate([bmat, bias_col], axis=1).astype(jnp.bfloat16)

    # ---- input: flatten + append ones row (bias carrier), cast to bf16 ----
    x2 = x.reshape(N, Cin * D, HW).astype(jnp.float32)
    ones = jnp.ones((N, 1, HW), jnp.float32)
    x_ext = jnp.concatenate([x2, ones], axis=1).astype(jnp.bfloat16)

    # ---- pick the cheaper contraction order ----
    flops_conv_first = CoDo * K * HW + CoDo * HW * HoWo
    flops_hw_first = K * HW * HoWo + CoDo * K * HoWo
    conv_first = flops_conv_first <= flops_hw_first

    # ---- batch elements per grid step: fatter steps, but keep >= 2 steps ----
    if block_n is None:
        block_n = 1
        if N >= 4:
            for cand in range(min(N // 2, 8), 1, -1):
                if N % cand == 0:
                    block_n = cand
                    break
    assert N % block_n == 0
    steps = N // block_n

    cost = pl.CostEstimate(
        flops=int(2 * N * (flops_conv_first if conv_first else flops_hw_first)),
        transcendentals=0,
        bytes_accessed=int(N * K * HW * 2 + HW * HoWo * 2 + CoDo * K * 2
                           + N * CoDo * HoWo * 4),
    )

    grid_spec = pltpu.PrefetchScalarGridSpec(
        num_scalar_prefetch=0,
        grid=(steps,),
        in_specs=[
            pl.BlockSpec((block_n, K, HW), lambda n: (n, 0, 0)),
            pl.BlockSpec((HW, HoWo), lambda n: (0, 0)),     # grid-invariant
            pl.BlockSpec((CoDo, K), lambda n: (0, 0)),      # grid-invariant
        ],
        out_specs=pl.BlockSpec((block_n, CoDo, HoWo), lambda n: (n, 0, 0)),
    )

    out = pl.pallas_call(
        _make_kernel(block_n, conv_first),
        out_shape=jax.ShapeDtypeStruct((N, CoDo, HoWo), jnp.float32),
        grid_spec=grid_spec,
        compiler_params=pltpu.CompilerParams(
            dimension_semantics=("parallel",)),
        cost_estimate=cost,
    )(x_ext, a_hw_t, bmat_ext)

    # Back to PyTorch NCDHW layout.
    return out.reshape(N, Cout, Do, Ho, Wo)


# ----------------------------------------------------------------------------
# Independent pure-JAX reference (f32 gather + lerp, PyTorch align_corners=False)
# ----------------------------------------------------------------------------
def reference(x, weight, bias, scale_factor):
    N, Cin, D, H, W = x.shape
    Cout = weight.shape[0]
    y = jnp.einsum('oc,ncdhw->nodhw', weight.reshape(Cout, Cin), x)
    y = y + bias.reshape(1, Cout, 1, 1, 1)

    def up1d(arr, axis, scale):
        I = arr.shape[axis]
        O = int(np.floor(I * scale))
        o = jnp.arange(O, dtype=jnp.float32)
        src = jnp.maximum((o + 0.5) / scale - 0.5, 0.0)
        i0 = jnp.clip(jnp.floor(src).astype(jnp.int32), 0, I - 1)
        i1 = jnp.minimum(i0 + 1, I - 1)
        lam = src - i0.astype(jnp.float32)
        g0 = jnp.take(arr, i0, axis=axis)
        g1 = jnp.take(arr, i1, axis=axis)
        shape = [1] * arr.ndim
        shape[axis] = O
        lam = lam.reshape(shape)
        return (1.0 - lam) * g0 + lam * g1

    y = up1d(y, 2, scale_factor)
    y = up1d(y, 3, scale_factor)
    y = up1d(y, 4, scale_factor)
    return y


if __name__ == "__main__":
    key = jax.random.PRNGKey(0)
    kx, kw, kb = jax.random.split(key, 3)

    N, in_size, out_size = 2, 4, 2
    D = H = W = 8
    scale_factor = 2

    x = jax.random.normal(kx, (N, in_size, D, H, W), jnp.float32)
    weight = 0.3 * jax.random.normal(kw, (out_size, in_size, 1, 1, 1), jnp.float32)
    bias = 0.1 * jax.random.normal(kb, (out_size,), jnp.float32)

    out = unet_dsv3(x, weight, bias, scale_factor)
    out = jax.block_until_ready(out)

    ref = reference(x, weight, bias, scale_factor)
    # Tolerance accounts for bf16 matmul operands (f32 accumulation kept).
    np.testing.assert_allclose(np.asarray(out), np.asarray(ref),
                               rtol=2e-2, atol=5e-2)
    print("KERNEL_OK")
</pallas_src>

<mosaic_0001>
module attributes {stable_mosaic.version = 11 : i64} {
  func.func @kernel(%arg0: i32, %arg1: memref<1x33x64xbf16, #tpu.memory_space<vmem>>, %arg2: memref<64x256xbf16, #tpu.memory_space<vmem>>, %arg3: memref<32x33xbf16, #tpu.memory_space<vmem>>, %arg4: memref<1x32x256xf32, #tpu.memory_space<vmem>>) attributes {dimension_semantics = [#tpu.dimension_semantics<parallel>], iteration_bounds = array<i64: 2>, scalar_prefetch = 0 : i64, scratch_operands = 0 : i64, tpu.core_type = #tpu.core_type<tc>, window_params = [{transform_indices = @transform_0, window_bounds = array<i64: 1, 33, 64>}, {pipeline_mode = #tpu.pipeline_mode<synchronous>, transform_indices = @transform_1, window_bounds = array<i64: 64, 256>}, {pipeline_mode = #tpu.pipeline_mode<synchronous>, transform_indices = @transform_2, window_bounds = array<i64: 32, 33>}, {transform_indices = @transform_3, window_bounds = array<i64: 1, 32, 256>}]} {
    %c0 = arith.constant 0 : index
    %c0_0 = arith.constant 0 : index
    %0 = vector.load %arg2[%c0, %c0_0] : memref<64x256xbf16, #tpu.memory_space<vmem>>, vector<64x256xbf16>
    %c0_1 = arith.constant 0 : index
    %c0_2 = arith.constant 0 : index
    %1 = vector.load %arg3[%c0_1, %c0_2] : memref<32x33xbf16, #tpu.memory_space<vmem>>, vector<32x33xbf16>
    %c0_3 = arith.constant 0 : index
    %c0_4 = arith.constant 0 : index
    %c0_5 = arith.constant 0 : index
    %2 = vector.load %arg1[%c0_3, %c0_4, %c0_5] : memref<1x33x64xbf16, #tpu.memory_space<vmem>>, vector<1x33x64xbf16>
    %3 = vector.shape_cast %2 : vector<1x33x64xbf16> to vector<33x64xbf16>
    %cst = arith.constant dense<0.000000e+00> : vector<32x64xf32>
    %4 = tpu.matmul %1, %3, %cst {dimension_numbers = #tpu.dot_dimension_numbers<[1], [0], [0], [1], [0, 0, 1, 1], [], []>} : vector<32x33xbf16>, vector<33x64xbf16>, vector<32x64xf32> -> vector<32x64xf32>
    %5 = arith.truncf %4 : vector<32x64xf32> to vector<32x64xbf16>
    %cst_6 = arith.constant dense<0.000000e+00> : vector<32x256xf32>
    %6 = tpu.matmul %5, %0, %cst_6 {dimension_numbers = #tpu.dot_dimension_numbers<[1], [0], [0], [1], [0, 0, 1, 1], [], []>} : vector<32x64xbf16>, vector<64x256xbf16>, vector<32x256xf32> -> vector<32x256xf32>
    %c0_7 = arith.constant 0 : index
    %c0_8 = arith.constant 0 : index
    %c0_9 = arith.constant 0 : index
    %7 = vector.load %arg4[%c0_7, %c0_8, %c0_9] : memref<1x32x256xf32, #tpu.memory_space<vmem>>, vector<1x32x256xf32>
    %8 = vector.shape_cast %7 : vector<1x32x256xf32> to vector<32x256xf32>
    %9 = vector.shape_cast %6 : vector<32x256xf32> to vector<1x32x256xf32>
    tpu.vector_store %arg4[%c0_7, %c0_8, %c0_9], %9 {strides = array<i32>} : memref<1x32x256xf32, #tpu.memory_space<vmem>>, vector<1x32x256xf32>,
    return
  }
  func.func @transform_0(%arg0: i32) -> (i32, i32, i32) {
    %c0_i32 = arith.constant 0 : i32
    %c0_i32_0 = arith.constant 0 : i32
    %c0_i32_1 = arith.constant 0 : i32
    return %arg0, %c0_i32, %c0_i32_0 : i32, i32, i32
  }
  func.func @transform_1(%arg0: i32) -> (i32, i32) {
    %c0_i32 = arith.constant 0 : i32
    %c0_i32_0 = arith.constant 0 : i32
    %c0_i32_1 = arith.constant 0 : i32
    return %c0_i32, %c0_i32_0 : i32, i32
  }
  func.func @transform_2(%arg0: i32) -> (i32, i32) {
    %c0_i32 = arith.constant 0 : i32
    %c0_i32_0 = arith.constant 0 : i32
    %c0_i32_1 = arith.constant 0 : i32
    return %c0_i32, %c0_i32_0 : i32, i32
  }
  func.func @transform_3(%arg0: i32) -> (i32, i32, i32) {
    %c0_i32 = arith.constant 0 : i32
    %c0_i32_0 = arith.constant 0 : i32
    %c0_i32_1 = arith.constant 0 : i32
    return %arg0, %c0_i32, %c0_i32_0 : i32, i32, i32
  }
}

</mosaic_0001>

<llo_original>
// kernel: tpu_custom_call.1
$region0: #{tpu_custom_call.1}
  #allocation0 [shape = 'u32[]', space=smem, size = 0x4, offset = 0x4, fixed_abs, tag = 'smem constant byte address 0x4 - core index']
  #allocation1 [shape = 'u32[72,128]{1,0:T(1,128)}', space=vmem, size = 0x9000, scoped, tag = 'internal scratch']
  %s0 = inlined_call_operand.vmem [shape: bf16[2,33,64], index: 0, kind: input, shape index: {}]
  %s1 = inlined_call_operand.vmem [shape: bf16[64,256], index: 1, kind: input, shape index: {}]
  %s2 = inlined_call_operand.hbm [shape: bf16[32,33], index: 2, kind: input, shape index: {}]
  %s3 = inlined_call_operand.hbm [shape: f32[2,32,256], index: 3, kind: output, shape index: {}]
  %s4 = sld [smem:[#allocation0]]
  $region49: #{tpu_custom_call.1} parent=0
    _
  %s6 = ssub.s32 1, %s4
  %s7 = scalar_select 0, %s6, %s4
  $region1: #{tpu_custom_call.1} parent=0
    #allocation2 [shape = 'u8[8192]{0}', space=vmem, size = 0x2000, scoped, tag = 'input window, operand 2, single buffered']
    #allocation3 [shape = 's32[2]{0}', space=sflag, size = 0x8, scoped, tag = 'scoped memory for tpu_custom_call.1']
    #allocation4 [shape = 's32[2]{0}', space=sflag, size = 0x8, scoped, tag = 'scoped memory for tpu_custom_call.1']
    #allocation5 [shape = 'u8[65536]{0}', space=vmem, size = 0x10000, scoped, tag = 'output window, operand 0']
    %8 = vsyncpa [#allocation3], 0
    %9 = vsyncpa [#allocation4], 0
    %s10 = scalar_lea.sflag [#allocation4], 1
    %11 = vsyncpa %s10, 0
    loop: start=0, step=1, limit=4
    $region2: #{tpu_custom_call.1} parent=1 // loop_pre_header
      _
    $region3: #{tpu_custom_call.1} parent=1 // loop_header
      %s13 = sphi 0, %s17
      %p14 = scmp.ge.s32.totalorder %s13, 4
      %s23 = sphi 0, %s25
      %s26 = sphi 0, %s23
      %s27 = sphi 0, %s26
      %s43 = sphi 0, %s27
      %s47 = sphi 0, %s47
      %s49 = sphi 0, %s47
      %s50 = sphi 0, %s49
      %s64 = sphi 0, %s50
      %s68 = sphi 0, %s68
      %s70 = sphi 0, %s68
      %s71 = sphi 0, %s70
      %s85 = sphi 0, %s71
      %s91 = sphi 0, %s93
      %s94 = sphi 0, %s91
      %s95 = sphi 0, %s94
      %s111 = sphi 0, %s95
    $region4: #{tpu_custom_call.1} parent=1 // loop_header_branch
      %16 = sbr.rel (%p14) target = $region8
    $region5: #{tpu_custom_call.1} parent=1 // loop_body
      %s18 = ssub.s32 %s13, 1
      %s19 = ssub.s32 %s13, 2
      %s20 = sadd.s32 %s13, 1
      %s21 = ssub.s32 %s13, %s20
      %p22 = scmp.eq.s32.totalorder %s21, 0
      %s24 = sadd.s32 %s23, 1
      %s25 = scalar_select %p22, %s23, %s24
      %p28 = pneg %p22
      %p29 = scmp.eq.s32.totalorder %s13, 1
      %p30 = por %p28, %p29
      %p31 = scmp.ne.s32.totalorder %s23, %s26
      %p32 = scmp.eq.s32.totalorder %s13, 0
      %p33 = por %p31, %p32
      %p34 = scmp.ne.s32.totalorder %s23, %s26
      %p35 = scmp.eq.s32.totalorder %s18, 1
      %p36 = por %p34, %p35
      %p37 = scmp.ne.s32.totalorder %s26, %s27
      %p38 = scmp.eq.s32.totalorder %s18, 0
      %p39 = por %p37, %p38
      %p40 = scmp.ne.s32.totalorder %s26, %s27
      %p41 = scmp.eq.s32.totalorder %s19, 1
      %p42 = por %p40, %p41
      %p44 = scmp.ne.s32.totalorder %s27, %s43
      %p45 = scmp.eq.s32.totalorder %s19, 0
      %p46 = por %p44, %p45
      %s48 = sadd.s32 %s47, 1
      %p51 = scmp.eq.s32.totalorder %s13, 1
      %p52 = scmp.ne.s32.totalorder %s47, %s49
      %p53 = scmp.eq.s32.totalorder %s13, 0
      %p54 = por %p52, %p53
      %p55 = scmp.ne.s32.totalorder %s47, %s49
      %p56 = scmp.eq.s32.totalorder %s18, 1
      %p57 = por %p55, %p56
      %p58 = scmp.ne.s32.totalorder %s49, %s50
      %p59 = scmp.eq.s32.totalorder %s18, 0
      %p60 = por %p58, %p59
      %p61 = scmp.ne.s32.totalorder %s49, %s50
      %p62 = scmp.eq.s32.totalorder %s19, 1
      %p63 = por %p61, %p62
      %p65 = scmp.ne.s32.totalorder %s50, %s64
      %p66 = scmp.eq.s32.totalorder %s19, 0
      %p67 = por %p65, %p66
      %s69 = sadd.s32 %s68, 1
      %p72 = scmp.eq.s32.totalorder %s13, 1
      %p73 = scmp.ne.s32.totalorder %s68, %s70
      %p74 = scmp.eq.s32.totalorder %s13, 0
      %p75 = por %p73, %p74
      %p76 = scmp.ne.s32.totalorder %s68, %s70
      %p77 = scmp.eq.s32.totalorder %s18, 1
      %p78 = por %p76, %p77
      %p79 = scmp.ne.s32.totalorder %s70, %s71
      %p80 = scmp.eq.s32.totalorder %s18, 0
      %p81 = por %p79, %p80
      %p82 = scmp.ne.s32.totalorder %s70, %s71
      %p83 = scmp.eq.s32.totalorder %s19, 1
      %p84 = por %p82, %p83
      %p86 = scmp.ne.s32.totalorder %s71, %s85
      %p87 = scmp.eq.s32.totalorder %s19, 0
      %p88 = por %p86, %p87
      %s89 = ssub.s32 %s13, %s20
      %p90 = scmp.eq.s32.totalorder %s89, 0
      %s92 = sadd.s32 %s91, 1
      %s93 = scalar_select %p90, %s91, %s92
      %p96 = pneg %p90
      %p97 = scmp.eq.s32.totalorder %s13, 1
      %p98 = por %p96, %p97
      %p99 = scmp.ne.s32.totalorder %s91, %s94
      %p100 = scmp.eq.s32.totalorder %s13, 0
      %p101 = por %p99, %p100
      %p102 = scmp.ne.s32.totalorder %s91, %s94
      %p103 = scmp.eq.s32.totalorder %s18, 1
      %p104 = por %p102, %p103
      %p105 = scmp.ne.s32.totalorder %s94, %s95
      %p106 = scmp.eq.s32.totalorder %s18, 0
      %p107 = por %p105, %p106
      %p108 = scmp.ne.s32.totalorder %s94, %s95
      %p109 = scmp.eq.s32.totalorder %s19, 1
      %p110 = por %p108, %p109
      %p112 = scmp.ne.s32.totalorder %s95, %s111
      %p113 = scmp.eq.s32.totalorder %s19, 0
      %p114 = por %p112, %p113
      %p115 = scmp.le.s32.totalorder 1, %s13
      %p116 = scmp.lt.s32.totalorder %s13, 3
      %p117 = pnand %p115, %p116
      %p118 = pneg %p117
      // Predicated region
      $region9: #{tpu_custom_call.1} parent=5 // pred_check
        _
      $region10: #{tpu_custom_call.1} parent=5 // pred_check_branch
        %120 = sbr.rel (%p117) target = $region12
      $region11: #{tpu_custom_call.1} parent=5 // pred_region
        %s121 = ssub.s32 %s13, 1
        // Predicated region
        $region13: #{tpu_custom_call.1} parent=11 // pred_check
          %p122 = pneg %p60
        $region14: #{tpu_custom_call.1} parent=11 // pred_check_branch
          %124 = sbr.rel (%p122) target = $region16
        $region15: #{tpu_custom_call.1} parent=11 // pred_region
          _
        $region16: #{tpu_custom_call.1} parent=11 // pred_fallthru
          _
        // Predicated region
        $region17: #{tpu_custom_call.1} parent=11 // pred_check
          %p125 = pneg %p81
        $region18: #{tpu_custom_call.1} parent=11 // pred_check_branch
          %127 = sbr.rel (%p125) target = $region20
        $region19: #{tpu_custom_call.1} parent=11 // pred_region
          %129 = vsyncadd [#allocation3], 0
          %s130 = sshll.u32 %s2, 4
          %s131 = int_to_ptr.hbm [resolvable:$true] %s130
          %s132 = sshll.u32 [#allocation2], 4
          %s133 = int_to_ptr.vmem [resolvable:$true] %s132
          %138 = dma.hbm_to_vmem [thread:$0]  %s131, 256, %s133, [#allocation3], 64, 64, 4
        $region20: #{tpu_custom_call.1} parent=11 // pred_fallthru
          _
      $region12: #{tpu_custom_call.1} parent=5 // pred_fallthru
        _
      %p139 = scmp.lt.s32.totalorder %s13, 2
      // Predicated region
      $region21: #{tpu_custom_call.1} parent=5 // pred_check
        %p140 = pneg %p139
      $region22: #{tpu_custom_call.1} parent=5 // pred_check_branch
        %142 = sbr.rel (%p140) target = $region24
      $region23: #{tpu_custom_call.1} parent=5 // pred_region
        // Predicated region
        $region25: #{tpu_custom_call.1} parent=23 // pred_check
          %p143 = pneg %p33
        $region26: #{tpu_custom_call.1} parent=23 // pred_check_branch
          %145 = sbr.rel (%p143) target = $region28
        $region27: #{tpu_custom_call.1} parent=23 // pred_region
          %p146 = scmp.lt.s32.totalorder %s13, 1
          %s147 = scalar_select %p146, %s13, 1
          %s148 = smul.addr %s147, 5
          %s149 = smul.addr %s148, 4
          %s150 = scalar_lea.vmem %s0, %s149
        $region28: #{tpu_custom_call.1} parent=23 // pred_fallthru
          _
      $region24: #{tpu_custom_call.1} parent=5 // pred_fallthru
        _
      %p151 = scmp.le.s32.totalorder 1, %s13
      %p152 = scmp.lt.s32.totalorder %s13, 3
      %p153 = pnand %p151, %p152
      %p154 = pneg %p153
      // Predicated region
      $region29: #{tpu_custom_call.1} parent=5 // pred_check
        _
      $region30: #{tpu_custom_call.1} parent=5 // pred_check_branch
        %156 = sbr.rel (%p153) target = $region32
      $region31: #{tpu_custom_call.1} parent=5 // pred_region
        %s157 = ssub.s32 %s13, 1
        // Predicated region
        $region33: #{tpu_custom_call.1} parent=31 // pred_check
          %p158 = pneg %p81
        $region34: #{tpu_custom_call.1} parent=31 // pred_check_branch
          %160 = sbr.rel (%p158) target = $region36
        $region35: #{tpu_custom_call.1} parent=31 // pred_region
          %162 = dma.done [#allocation3], 256
        $region36: #{tpu_custom_call.1} parent=31 // pred_fallthru
          _
        %p163 = scmp.lt.s32.totalorder %s18, 1
        %s164 = scalar_select %p163, %s18, 1
        %s165 = smul.addr %s164, 5
        %s166 = smul.addr %s165, 4
        %s167 = scalar_lea.vmem %s0, %s166
        %p168 = pneg %p39
        %p169 = pneg %p36
        %p170 = pneg %p60
        %p171 = pneg %p57
        %p172 = pneg %p81
        %p173 = pneg %p78
        %p174 = pneg %p107
        %p175 = pneg %p104
        %s176 = sand.u32 %s94, 1
        %s177 = scalar_lea.sflag [#allocation4], %s176
        %s178 = sand.u32 %s94, 1
        %s179 = smul.addr %s178, 64
        %s180 = scalar_lea.vmem [#allocation5], %s179
        %p181 = scmp.lt.s32.totalorder %s18, 1
        %s182 = scalar_select %p181, %s18, 1
        %s183 = smul.addr %s182, 5
        %s184 = smul.addr %s183, 4
        %s185 = scalar_lea.vmem %s0, %s184
        %v187 = vld [vmem:[%s1] sm:$0xff]
        %v188 = vld [vmem:[%s1 + $0x8] sm:$0xff]
        %v189 = vld [vmem:[%s1 + $0x10] sm:$0xff]
        %v190 = vld [vmem:[%s1 + $0x18] sm:$0xff]
        %v191 = vld [vmem:[%s1 + $0x20] sm:$0xff]
        %v192 = vld [vmem:[%s1 + $0x28] sm:$0xff]
        %v193 = vld [vmem:[%s1 + $0x30] sm:$0xff]
        %v194 = vld [vmem:[%s1 + $0x38] sm:$0xff]
        %v195 = vld [vmem:[#allocation2] sm:$0xf]
        %v196 = vld [vmem:[#allocation2 + $0x4] sm:$0xf]
        %v197 = vld [vmem:[#allocation2 + $0x8] sm:$0xf]
        %v198 = vld [vmem:[#allocation2 + $0xc] sm:$0xf]
        %v199 = vld [vmem:[%s185] sm:$0xf]
        %v200 = vld [vmem:[%s185 + $0x4] sm:$0xf]
        %v201 = vld [vmem:[%s185 + $0x8] sm:$0xf]
        %v202 = vld [vmem:[%s185 + $0xc] sm:$0xf]
        %v203 = vld [vmem:[%s185 + $0x10] sm:$0x1]
        %v208 = vunpack.c.l.b16 %v195
        %v209 = vunpack.c.l.b16 %v196
        %v210 = vunpack.c.l.b16 %v197
        %v211 = vunpack.c.l.b16 %v198
        %v212 = vpack.c.b16 %v209, %v208
        %v213 = vpack.c.b16 %v211, %v210
        %v219 = vunpack.c.l.b16 %v199
        %v220 = vunpack.c.l.b16 %v200
        %v221 = vunpack.c.l.b16 %v201
        %v222 = vunpack.c.l.b16 %v202
        %v223 = vunpack.c.l.b16 %v203
        %v224 = vpack.c.b16 %v220, %v219
        %v225 = vpack.c.b16 %v222, %v221
        %v226 = vpack.c.b16 %v223, %v223
        %vm229 = vcmask 269312
        %v231 = vsel %vm229, %v212, 0
        %v234 = vsel %vm229, %v213, 0
        %vm236 = vcmask 1040384
        %v237 = vsel 0, 4294967295, 65535
        %v238 = vsel %vm236, %v237, 0
        %v240 = vand.u32 %v226, %v238
        %242 = vmatpush.bf16.msra.mxu0 0
        %243 = vmatpush.bf16.msra.mxu0 0
        %244 = vmatpush.bf16.msra.mxu0 0
        %245 = vmatpush.bf16.msra.mxu0 0
        %246 = vmatpush.bf16.msra.mxu0 0
        %247 = vmatpush.bf16.msra.mxu0 %v240
        %248 = vmatpush.bf16.msra.mxu0 %v225
        %249 = vmatpush.bf16.msra.mxu0 %v224
        %250 = vmatmul.bf16.gmra.mxu0 %v231
        %v251 = vpop.f32.mrf.mxu0
        %v252 = vadd.f32 0.0, %v251
        %v253 = vpop.f32.mrf.mxu0
        %v254 = vadd.f32 0.0, %v253
        %255 = vmatmul.bf16.gmra.mxu0 %v234
        %v256 = vpop.f32.mrf.mxu0
        %v257 = vadd.f32 0.0, %v256
        %v258 = vpop.f32.mrf.mxu0
        %v259 = vadd.f32 0.0, %v258
        %260 = vdwg.mxu0
        %v261 = vpack.c.bf16 %v254, %v252
        %v262 = vpack.c.bf16 %v259, %v257
        %v271 = vunpack.c.l.b16 %v187
        %v272 = vunpack.c.h.b16 %v187
        %v273 = vunpack.c.l.b16 %v188
        %v274 = vunpack.c.h.b16 %v188
        %v275 = vunpack.c.l.b16 %v189
        %v276 = vunpack.c.h.b16 %v189
        %v277 = vunpack.c.l.b16 %v190
        %v278 = vunpack.c.h.b16 %v190
        %v279 = vunpack.c.l.b16 %v191
        %v280 = vunpack.c.h.b16 %v191
        %v281 = vunpack.c.l.b16 %v192
        %v282 = vunpack.c.h.b16 %v192
        %v283 = vunpack.c.l.b16 %v193
        %v284 = vunpack.c.h.b16 %v193
        %v285 = vunpack.c.l.b16 %v194
        %v286 = vunpack.c.h.b16 %v194
        %v287 = vpack.c.b16 %v273, %v271
        %v288 = vpack.c.b16 %v274, %v272
        %v289 = vpack.c.b16 %v277, %v275
        %v290 = vpack.c.b16 %v278, %v276
        %v291 = vpack.c.b16 %v281, %v279
        %v292 = vpack.c.b16 %v282, %v280
        %v293 = vpack.c.b16 %v285, %v283
        %v294 = vpack.c.b16 %v286, %v284
        %vm303 = vcmask 523264
        %v305 = vsel %vm303, %v261, 0
        %v308 = vsel %vm303, %v262, 0
        %310 = vmatpush.bf16.msra.mxu0 0
        %311 = vmatpush.bf16.msra.mxu0 0
        %312 = vmatpush.bf16.msra.mxu0 0
        %313 = vmatpush.bf16.msra.mxu0 0
        %314 = vmatpush.bf16.msra.mxu0 %v293
        %315 = vmatpush.bf16.msra.mxu0 %v291
        %316 = vmatpush.bf16.msra.mxu0 %v289
        %317 = vmatpush.bf16.msra.mxu0 %v287
        %318 = vmatmul.bf16.gmra.mxu0 %v305
        %v319 = vpop.f32.mrf.mxu0
        %v320 = vadd.f32 0.0, %v319
        %v321 = vpop.f32.mrf.mxu0
        %v322 = vadd.f32 0.0, %v321
        %323 = vmatmul.bf16.gmra.mxu0 %v308
        %v324 = vpop.f32.mrf.mxu0
        %v325 = vadd.f32 0.0, %v324
        %v326 = vpop.f32.mrf.mxu0
        %v327 = vadd.f32 0.0, %v326
        %328 = vdwg.mxu0
        %329 = vmatpush.bf16.msra.mxu0 0
        %330 = vmatpush.bf16.msra.mxu0 0
        %331 = vmatpush.bf16.msra.mxu0 0
        %332 = vmatpush.bf16.msra.mxu0 0
        %333 = vmatpush.bf16.msra.mxu0 %v294
        %334 = vmatpush.bf16.msra.mxu0 %v292
        %335 = vmatpush.bf16.msra.mxu0 %v290
        %336 = vmatpush.bf16.msra.mxu0 %v288
        %337 = vmatmul.bf16.gmra.mxu0 %v305
        %v338 = vpop.f32.mrf.mxu0
        %v339 = vadd.f32 0.0, %v338
        %v340 = vpop.f32.mrf.mxu0
        %v341 = vadd.f32 0.0, %v340
        %342 = vmatmul.bf16.gmra.mxu0 %v308
        %v343 = vpop.f32.mrf.mxu0
        %v344 = vadd.f32 0.0, %v343
        %v345 = vpop.f32.mrf.mxu0
        %v346 = vadd.f32 0.0, %v345
        %347 = vdwg.mxu0
        %348 = vst [vmem:[%s180] sm:$0xff] %v320
        %349 = vst [vmem:[%s180 + $0x8] sm:$0xff] %v339
        %350 = vst [vmem:[%s180 + $0x10] sm:$0xff] %v322
        %351 = vst [vmem:[%s180 + $0x18] sm:$0xff] %v341
        %352 = vst [vmem:[%s180 + $0x20] sm:$0xff] %v325
        %353 = vst [vmem:[%s180 + $0x28] sm:$0xff] %v344
        %354 = vst [vmem:[%s180 + $0x30] sm:$0xff] %v327
        %355 = vst [vmem:[%s180 + $0x38] sm:$0xff] %v346
        %s356 = sand.u32 %s94, 1
        %s357 = scalar_lea.sflag [#allocation4], %s356
        %s358 = sand.u32 %s94, 1
        %s359 = smul.addr %s358, 64
        %s360 = scalar_lea.vmem [#allocation5], %s359
        // Predicated region
        $region37: #{tpu_custom_call.1} parent=31 // pred_check
          %p361 = pneg %p104
        $region38: #{tpu_custom_call.1} parent=31 // pred_check_branch
          %363 = sbr.rel (%p361) target = $region40
        $region39: #{tpu_custom_call.1} parent=31 // pred_region
          %365 = vsyncadd %s357, 0
          %s366 = smul.addr %s18, 8
          %s367 = smul.addr %s366, 8
          %s368 = scalar_lea.hbm %s3, %s367
          %s369 = sshll.u32 %s360, 4
          %s370 = int_to_ptr.vmem [resolvable:$true] %s369
          %s371 = sshll.u32 %s368, 4
          %s372 = int_to_ptr.hbm [resolvable:$true] %s371
          %377 = dma.vmem_to_hbm [thread:$0]  %s370, 1024, %s372, %s357, 256, 256, 16
        $region40: #{tpu_custom_call.1} parent=31 // pred_fallthru
          _
      $region32: #{tpu_custom_call.1} parent=5 // pred_fallthru
        _
      %p378 = scmp.le.s32.totalorder 2, %s13
      // Predicated region
      $region41: #{tpu_custom_call.1} parent=5 // pred_check
        %p379 = pneg %p378
      $region42: #{tpu_custom_call.1} parent=5 // pred_check_branch
        %381 = sbr.rel (%p379) target = $region44
      $region43: #{tpu_custom_call.1} parent=5 // pred_region
        %s382 = ssub.s32 %s13, 2
        // Predicated region
        $region45: #{tpu_custom_call.1} parent=43 // pred_check
          %p383 = pneg %p110
        $region46: #{tpu_custom_call.1} parent=43 // pred_check_branch
          %385 = sbr.rel (%p383) target = $region48
        $region47: #{tpu_custom_call.1} parent=43 // pred_region
          %s386 = sand.u32 %s95, 1
          %s387 = scalar_lea.sflag [#allocation4], %s386
          %s388 = sand.u32 %s95, 1
          %s389 = smul.addr %s388, 64
          %s390 = scalar_lea.vmem [#allocation5], %s389
          %392 = dma.done %s387, 1024
        $region48: #{tpu_custom_call.1} parent=43 // pred_fallthru
          _
      $region44: #{tpu_custom_call.1} parent=5 // pred_fallthru
        _
    $region6: #{tpu_custom_call.1} parent=1 // loop_footer
      %s17 = sadd.s32 1, %s13
    $region7: #{tpu_custom_call.1} parent=1 // loop_footer_branch
      %12 = sbr.rel target = $region3
    $region8: #{tpu_custom_call.1} parent=1 // loop_exit
      _
    %393 = vsyncpa [#allocation3], 1
    %s394 = scalar_lea.sflag [#allocation3], 1
    %395 = vsyncpa %s394, 1
    %396 = vsyncpa [#allocation4], 1
    %s397 = scalar_lea.sflag [#allocation4], 1
    %398 = vsyncpa %s397, 1

</llo_original>
